<compile_context>
chip_gen: v6e
topology: v6e:2x2x1
jax: 0.10.0
libtpu: 0.0.40
codegen_flags: <defaults>
</compile_context>

<pallas_src>
import functools

import jax
import jax.numpy as jnp
from jax.experimental import pallas as pl
from jax.experimental.pallas import tpu as pltpu


def _round_up(x, m):
    return ((x + m - 1) // m) * m


def _cnn_kernel(seq_len, apply_bn,
                emb_ref, w_in_ref, b_in_ref,
                conv_w_ref, conv_b_ref, gamma_ref, beta_ref,
                w_out_ref, b_out_ref,
                out_ref, act_ref):
    """One grid step == one conv layer.

    Layer weights are streamed per step via their BlockSpecs (auto
    double-buffered DMA, overlapped with the previous layer's MXU work).
    The bf16 activation lives in a persistent VMEM scratch across steps.
    """
    eps = 1e-5
    layer = pl.program_id(0)
    R, Hp = act_ref.shape

    # ---- layer-0 prologue: embedding -> input linear -> tanh ---------------
    @pl.when(layer == 0)
    def _input_linear():
        h = jnp.dot(emb_ref[...], w_in_ref[...],
                    preferred_element_type=jnp.float32)
        act_ref[...] = jnp.tanh(h + b_in_ref[...]).astype(jnp.bfloat16)

    xb = act_ref[...]                          # (R, Hp) bf16 activation
    x = xb.astype(jnp.float32)                 # 32-bit copy for sublane rolls
                                               # + masks (v5e-friendly path)

    # Full-width boundary masks (built once per layer step).  Rows are
    # batch-major: row r = b * L + t, so t == r % L.
    t_idx = jax.lax.broadcasted_iota(jnp.int32, (R, Hp), 0) % seq_len
    left_ok = t_idx != 0                       # row has a valid t-1 neighbour
    right_ok = t_idx != (seq_len - 1)          # row has a valid t+1 neighbour

    # Sequence shifts via XLU roll (non-negative shifts only); zero the rows
    # that would wrap across a sentence / batch boundary, then cast at the
    # MXU boundary.
    x_left = jnp.where(left_ok, pltpu.roll(x, shift=1, axis=0),
                       0.0).astype(jnp.bfloat16)
    x_right = jnp.where(right_ok, pltpu.roll(x, shift=R - 1, axis=0),
                        0.0).astype(jnp.bfloat16)

    # Conv1d(k=3, pad=1) as three accumulating MXU dots against static
    # (Hp, Hp) slices of this layer's fused weight — no (R, 3*Hp) slab.
    y = jnp.dot(x_left, conv_w_ref[0, 0], preferred_element_type=jnp.float32)
    y = y + jnp.dot(xb, conv_w_ref[0, 1], preferred_element_type=jnp.float32)
    y = y + jnp.dot(x_right, conv_w_ref[0, 2],
                    preferred_element_type=jnp.float32)
    y = jnp.maximum(y + conv_b_ref[0], 0.0)    # conv bias + ReLU
    # Dropout: identity (inference semantics).

    if apply_bn:
        # Training-mode BatchNorm1d over (batch, length) per channel, biased
        # variance, eps=1e-5.  Two-pass (centered) variance for stability.
        mu = jnp.mean(y, axis=0, keepdims=True)
        d = y - mu
        var = jnp.mean(d * d, axis=0, keepdims=True)
        scale = gamma_ref[0] * jax.lax.rsqrt(var + eps)
        y = d * scale + beta_ref[0]

    yb = y.astype(jnp.bfloat16)
    act_ref[...] = yb                          # carry to the next layer

    # ---- last-layer epilogue: output linear (lane-dense store) -------------
    @pl.when(layer == pl.num_programs(0) - 1)
    def _output_linear():
        out = jnp.dot(yb, w_out_ref[...],
                      preferred_element_type=jnp.float32) + b_out_ref[...]
        out_ref[...] = out


def prepare_params(params, *, num_layers):
    """One-time parameter prep (call once, outside the per-step forward).

    Pads weights to lane-dense (multiple-of-128) shapes and casts all matmul
    operands to bf16.  Padding is exact: padded channels stay identically
    zero through tanh / conv / ReLU / BN.
    """
    E, H = params["w_in"].shape
    T = params["w_out"].shape[1]
    assert params["conv_w"].shape[0] == num_layers
    Hp = _round_up(H, 128)
    Tp = _round_up(T, 128)

    def pad2(a, rows, cols):
        return jnp.pad(a, ((0, rows - a.shape[0]), (0, cols - a.shape[1])))

    return {
        "word_emb": params["word_emb"].astype(jnp.bfloat16),            # (V, E)
        "w_in": pad2(params["w_in"], E, Hp).astype(jnp.bfloat16),       # (E, Hp)
        "b_in": pad2(params["b_in"], 1, Hp).astype(jnp.float32),        # (1, Hp)
        "conv_w": jnp.pad(params["conv_w"],
                          ((0, 0), (0, 0), (0, Hp - H), (0, Hp - H))
                          ).astype(jnp.bfloat16),                       # (NL,3,Hp,Hp)
        "conv_b": jnp.pad(params["conv_b"],
                          ((0, 0), (0, 0), (0, Hp - H))).astype(jnp.float32),
        "bn_gamma": jnp.pad(params["bn_gamma"],
                            ((0, 0), (0, 0), (0, Hp - H))).astype(jnp.float32),
        "bn_beta": jnp.pad(params["bn_beta"],
                           ((0, 0), (0, 0), (0, Hp - H))).astype(jnp.float32),
        "w_out": pad2(params["w_out"], Hp, Tp).astype(jnp.bfloat16),    # (Hp, Tp)
        "b_out": pad2(params["b_out"], 1, Tp).astype(jnp.float32),      # (1, Tp)
    }


@functools.partial(jax.jit, static_argnames=("num_layers", "num_of_tags"))
def cnn_forward(sentence, prepared, *, num_layers, num_of_tags):
    """sentence: (B, L) int32 word ids -> (B, L, num_of_tags) f32 logits."""
    B, L = sentence.shape
    R = B * L
    E = prepared["w_in"].shape[0]
    Hp = prepared["w_in"].shape[1]
    Tp = prepared["w_out"].shape[1]

    # Embedding gather stays plain-JAX glue for now (see TODO at top).
    emb = jnp.take(prepared["word_emb"], sentence.reshape(-1), axis=0)  # (R,E) bf16

    apply_bn = B > 1   # static: same gate as reference `sentence.size(0) > 1`

    # Derive the VMEM budget from the actual working set (double-buffered
    # inputs, resident output buffer, activation scratch, in-flight f32
    # intermediates) instead of a hard-coded limit; clamp to v7x's 64 MiB.
    per_layer_w = 3 * Hp * Hp * 2 + 3 * Hp * 4
    resident_in = R * E * 2 + E * Hp * 2 + Hp * 4 + Hp * Tp * 2 + Tp * 4
    out_buf = R * Tp * 4
    working = R * Hp * 2 + 6 * R * Hp * 4
    needed = 2 * (per_layer_w + resident_in + out_buf) + working
    vmem_limit = int(min(64 * 1024 * 1024,
                         max(needed + (8 << 20), 16 << 20)))

    kernel = functools.partial(_cnn_kernel, L, apply_bn)

    out = pl.pallas_call(
        kernel,
        grid=(num_layers,),
        out_shape=jax.ShapeDtypeStruct((R, Tp), jnp.float32),
        in_specs=[
            pl.BlockSpec((R, E), lambda l: (0, 0)),                # emb (resident)
            pl.BlockSpec((E, Hp), lambda l: (0, 0)),               # w_in
            pl.BlockSpec((1, Hp), lambda l: (0, 0)),               # b_in
            pl.BlockSpec((1, 3, Hp, Hp), lambda l: (l, 0, 0, 0)),  # conv_w (streamed)
            pl.BlockSpec((1, 1, Hp), lambda l: (l, 0, 0)),         # conv_b (streamed)
            pl.BlockSpec((1, 1, Hp), lambda l: (l, 0, 0)),         # bn gamma
            pl.BlockSpec((1, 1, Hp), lambda l: (l, 0, 0)),         # bn beta
            pl.BlockSpec((Hp, Tp), lambda l: (0, 0)),              # w_out
            pl.BlockSpec((1, Tp), lambda l: (0, 0)),               # b_out
        ],
        out_specs=pl.BlockSpec((R, Tp), lambda l: (0, 0)),
        scratch_shapes=[pltpu.VMEM((R, Hp), jnp.bfloat16)],        # carried act
        compiler_params=pltpu.CompilerParams(
            dimension_semantics=("arbitrary",),    # layers are sequential
            vmem_limit_bytes=vmem_limit),
    )(emb,
      prepared["w_in"], prepared["b_in"],
      prepared["conv_w"], prepared["conv_b"],
      prepared["bn_gamma"], prepared["bn_beta"],
      prepared["w_out"], prepared["b_out"])

    return out[:, :num_of_tags].reshape(B, L, num_of_tags)


def init_params(key, *, vocab_size, word_embedding_dim, hidden_dim,
                num_layers, num_of_tags):
    ks = jax.random.split(key, 7)
    E, H, T = word_embedding_dim, hidden_dim, num_of_tags
    params = {
        "word_emb": jax.random.normal(ks[0], (vocab_size, E), jnp.float32) * 0.1,
        "w_in": jax.random.normal(ks[1], (E, H), jnp.float32) * (1.0 / jnp.sqrt(E)),
        "b_in": jax.random.normal(ks[2], (1, H), jnp.float32) * 0.01,
        # conv weights stored as (num_layers, 3, in_ch, out_ch)
        # (== transpose of PyTorch's (out_ch, in_ch, kernel)); tap 0 -> x_{t-1}.
        "conv_w": jax.random.normal(ks[3], (num_layers, 3, H, H), jnp.float32)
                  * (1.0 / jnp.sqrt(3 * H)),
        "conv_b": jax.random.normal(ks[4], (num_layers, 1, H), jnp.float32) * 0.01,
        "bn_gamma": jnp.ones((num_layers, 1, H), jnp.float32),
        "bn_beta": jnp.zeros((num_layers, 1, H), jnp.float32),
        "w_out": jax.random.normal(ks[5], (H, T), jnp.float32)
                 * (1.0 / jnp.sqrt(H)),
        "b_out": jax.random.normal(ks[6], (1, T), jnp.float32) * 0.01,
    }
    return params


if __name__ == "__main__":
    # Small, module-consistent shapes.
    vocab_size = 50
    word_embedding_dim = 16
    hidden_dim = 32
    num_layers = 2
    num_of_tags = 8
    batch_size = 2
    sent_length = 16

    key = jax.random.PRNGKey(0)
    kp, kx = jax.random.split(key)
    params = init_params(kp,
                         vocab_size=vocab_size,
                         word_embedding_dim=word_embedding_dim,
                         hidden_dim=hidden_dim,
                         num_layers=num_layers,
                         num_of_tags=num_of_tags)

    # One-time weight prep (padding / bf16 casts hoisted out of the forward).
    prepared = prepare_params(params, num_layers=num_layers)

    sentence = jax.random.randint(kx, (batch_size, sent_length), 0, vocab_size,
                                  dtype=jnp.int32)

    out = cnn_forward(sentence, prepared,
                      num_layers=num_layers, num_of_tags=num_of_tags)
    out = jax.block_until_ready(out)
    assert out.shape == (batch_size, sent_length, num_of_tags)
    assert bool(jnp.all(jnp.isfinite(out)))
    print("KERNEL_OK")
</pallas_src>

<mosaic_0001>
module attributes {stable_mosaic.version = 11 : i64} {
  func.func @_cnn_kernel(%arg0: i32, %arg1: memref<32x16xbf16, #tpu.memory_space<vmem>>, %arg2: memref<16x128xbf16, #tpu.memory_space<vmem>>, %arg3: memref<1x128xf32, #tpu.memory_space<vmem>>, %arg4: memref<1x3x128x128xbf16, #tpu.memory_space<vmem>>, %arg5: memref<1x1x128xf32, #tpu.memory_space<vmem>>, %arg6: memref<1x1x128xf32, #tpu.memory_space<vmem>>, %arg7: memref<1x1x128xf32, #tpu.memory_space<vmem>>, %arg8: memref<128x128xbf16, #tpu.memory_space<vmem>>, %arg9: memref<1x128xf32, #tpu.memory_space<vmem>>, %arg10: memref<32x128xf32, #tpu.memory_space<vmem>>, %arg11: memref<32x128xbf16, #tpu.memory_space<vmem>>) attributes {dimension_semantics = [#tpu.dimension_semantics<arbitrary>], iteration_bounds = array<i64: 2>, scalar_prefetch = 0 : i64, scratch_operands = 1 : i64, tpu.core_type = #tpu.core_type<tc>, window_params = [{pipeline_mode = #tpu.pipeline_mode<synchronous>, transform_indices = @transform_0, window_bounds = array<i64: 32, 16>}, {pipeline_mode = #tpu.pipeline_mode<synchronous>, transform_indices = @transform_1, window_bounds = array<i64: 16, 128>}, {pipeline_mode = #tpu.pipeline_mode<synchronous>, transform_indices = @transform_2, window_bounds = array<i64: 1, 128>}, {transform_indices = @transform_3, window_bounds = array<i64: 1, 3, 128, 128>}, {transform_indices = @transform_4, window_bounds = array<i64: 1, 1, 128>}, {transform_indices = @transform_5, window_bounds = array<i64: 1, 1, 128>}, {transform_indices = @transform_6, window_bounds = array<i64: 1, 1, 128>}, {pipeline_mode = #tpu.pipeline_mode<synchronous>, transform_indices = @transform_7, window_bounds = array<i64: 128, 128>}, {pipeline_mode = #tpu.pipeline_mode<synchronous>, transform_indices = @transform_8, window_bounds = array<i64: 1, 128>}, {pipeline_mode = #tpu.pipeline_mode<synchronous>, transform_indices = @transform_9, window_bounds = array<i64: 32, 128>}]} {
    %c0_i32 = arith.constant 0 : i32
    %0 = arith.cmpi eq, %arg0, %c0_i32 : i32
    %1 = arith.extui %0 : i1 to i32
    %c0_i32_0 = arith.constant 0 : i32
    %2 = arith.cmpi ne, %1, %c0_i32_0 : i32
    scf.if %2 {
      %c0_41 = arith.constant 0 : index
      %c0_42 = arith.constant 0 : index
      %79 = vector.load %arg1[%c0_41, %c0_42] : memref<32x16xbf16, #tpu.memory_space<vmem>>, vector<32x16xbf16>
      %c0_43 = arith.constant 0 : index
      %c0_44 = arith.constant 0 : index
      %80 = vector.load %arg2[%c0_43, %c0_44] : memref<16x128xbf16, #tpu.memory_space<vmem>>, vector<16x128xbf16>
      %cst_45 = arith.constant dense<0.000000e+00> : vector<32x128xf32>
      %81 = tpu.matmul %79, %80, %cst_45 {dimension_numbers = #tpu.dot_dimension_numbers<[1], [0], [0], [1], [0, 0, 1, 1], [], []>} : vector<32x16xbf16>, vector<16x128xbf16>, vector<32x128xf32> -> vector<32x128xf32>
      %c0_46 = arith.constant 0 : index
      %c0_47 = arith.constant 0 : index
      %82 = vector.load %arg3[%c0_46, %c0_47] : memref<1x128xf32, #tpu.memory_space<vmem>>, vector<1x128xf32>
      %83 = vector.broadcast %82 : vector<1x128xf32> to vector<32x128xf32>
      %84 = arith.addf %81, %83 : vector<32x128xf32>
      %85 = math.tanh %84 : vector<32x128xf32>
      %86 = arith.truncf %85 : vector<32x128xf32> to vector<32x128xbf16>
      %c0_48 = arith.constant 0 : index
      %c0_49 = arith.constant 0 : index
      %87 = vector.load %arg11[%c0_48, %c0_49] : memref<32x128xbf16, #tpu.memory_space<vmem>>, vector<32x128xbf16>
      tpu.vector_store %arg11[%c0_48, %c0_49], %86 {strides = array<i32>} : memref<32x128xbf16, #tpu.memory_space<vmem>>, vector<32x128xbf16>,
    } else {
    }
    %c0 = arith.constant 0 : index
    %c0_1 = arith.constant 0 : index
    %3 = vector.load %arg11[%c0, %c0_1] : memref<32x128xbf16, #tpu.memory_space<vmem>>, vector<32x128xbf16>
    %4 = arith.extf %3 : vector<32x128xbf16> to vector<32x128xf32>
    %5 = tpu.iota {dimensions = array<i32: 0>} : vector<32x128xi32>
    %c16_i32 = arith.constant 16 : i32
    %c0_i32_2 = arith.constant 0 : i32
    %6 = arith.cmpi eq, %c16_i32, %c0_i32_2 : i32
    %c1_i32 = arith.constant 1 : i32
    %7 = arith.select %6, %c1_i32, %c16_i32 : i32
    %8 = vector.broadcast %7 : i32 to vector<32x128xi32>
    %9 = arith.remsi %5, %8 : vector<32x128xi32>
    %c0_i32_3 = arith.constant 0 : i32
    %10 = vector.broadcast %c0_i32_3 : i32 to vector<32x128xi32>
    %11 = arith.cmpi ne, %9, %10 : vector<32x128xi32>
    %c0_i32_4 = arith.constant 0 : i32
    %12 = vector.broadcast %c0_i32_4 : i32 to vector<32x128xi32>
    %13 = arith.cmpi slt, %9, %12 : vector<32x128xi32>
    %c0_i32_5 = arith.constant 0 : i32
    %14 = arith.cmpi slt, %7, %c0_i32_5 : i32
    %15 = vector.broadcast %14 : i1 to vector<32x128xi1>
    %16 = vector.broadcast %15 : vector<32x128xi1> to vector<32x128xi1>
    %17 = arith.xori %13, %16 : vector<32x128xi1>
    %18 = arith.andi %17, %11 : vector<32x128xi1>
    %19 = vector.broadcast %7 : i32 to vector<32x128xi32>
    %20 = arith.addi %9, %19 : vector<32x128xi32>
    %21 = arith.select %18, %20, %9 : vector<32x128xi1>, vector<32x128xi32>
    %c0_i32_6 = arith.constant 0 : i32
    %22 = vector.broadcast %c0_i32_6 : i32 to vector<32x128xi32>
    %23 = arith.cmpi ne, %21, %22 : vector<32x128xi32>
    %c15_i32 = arith.constant 15 : i32
    %24 = vector.broadcast %c15_i32 : i32 to vector<32x128xi32>
    %25 = arith.cmpi ne, %21, %24 : vector<32x128xi32>
    %c1_i32_7 = arith.constant 1 : i32
    %26 = tpu.dynamic_rotate %4 by %c1_i32_7 dim 0 : vector<32x128xf32>, i32 -> vector<32x128xf32>
    %cst = arith.constant 0.000000e+00 : f32
    %27 = vector.broadcast %cst : f32 to vector<32x128xf32>
    %28 = arith.select %23, %26, %27 : vector<32x128xi1>, vector<32x128xf32>
    %29 = arith.truncf %28 : vector<32x128xf32> to vector<32x128xbf16>
    %c31_i32 = arith.constant 31 : i32
    %30 = tpu.dynamic_rotate %4 by %c31_i32 dim 0 : vector<32x128xf32>, i32 -> vector<32x128xf32>
    %cst_8 = arith.constant 0.000000e+00 : f32
    %31 = vector.broadcast %cst_8 : f32 to vector<32x128xf32>
    %32 = arith.select %25, %30, %31 : vector<32x128xi1>, vector<32x128xf32>
    %33 = arith.truncf %32 : vector<32x128xf32> to vector<32x128xbf16>
    %c0_9 = arith.constant 0 : index
    %c0_10 = arith.constant 0 : index
    %c0_11 = arith.constant 0 : index
    %c0_12 = arith.constant 0 : index
    %34 = vector.load %arg4[%c0_9, %c0_10, %c0_11, %c0_12] : memref<1x3x128x128xbf16, #tpu.memory_space<vmem>>, vector<1x1x128x128xbf16>
    %35 = vector.shape_cast %34 : vector<1x1x128x128xbf16> to vector<128x128xbf16>
    %cst_13 = arith.constant dense<0.000000e+00> : vector<32x128xf32>
    %36 = tpu.matmul %29, %35, %cst_13 {dimension_numbers = #tpu.dot_dimension_numbers<[1], [0], [0], [1], [0, 0, 1, 1], [], []>} : vector<32x128xbf16>, vector<128x128xbf16>, vector<32x128xf32> -> vector<32x128xf32>
    %c0_14 = arith.constant 0 : index
    %c1 = arith.constant 1 : index
    %c0_15 = arith.constant 0 : index
    %c0_16 = arith.constant 0 : index
    %37 = vector.load %arg4[%c0_14, %c1, %c0_15, %c0_16] : memref<1x3x128x128xbf16, #tpu.memory_space<vmem>>, vector<1x1x128x128xbf16>
    %38 = vector.shape_cast %37 : vector<1x1x128x128xbf16> to vector<128x128xbf16>
    %cst_17 = arith.constant dense<0.000000e+00> : vector<32x128xf32>
    %39 = tpu.matmul %3, %38, %cst_17 {dimension_numbers = #tpu.dot_dimension_numbers<[1], [0], [0], [1], [0, 0, 1, 1], [], []>} : vector<32x128xbf16>, vector<128x128xbf16>, vector<32x128xf32> -> vector<32x128xf32>
    %40 = arith.addf %36, %39 : vector<32x128xf32>
    %c0_18 = arith.constant 0 : index
    %c2 = arith.constant 2 : index
    %c0_19 = arith.constant 0 : index
    %c0_20 = arith.constant 0 : index
    %41 = vector.load %arg4[%c0_18, %c2, %c0_19, %c0_20] : memref<1x3x128x128xbf16, #tpu.memory_space<vmem>>, vector<1x1x128x128xbf16>
    %42 = vector.shape_cast %41 : vector<1x1x128x128xbf16> to vector<128x128xbf16>
    %cst_21 = arith.constant dense<0.000000e+00> : vector<32x128xf32>
    %43 = tpu.matmul %33, %42, %cst_21 {dimension_numbers = #tpu.dot_dimension_numbers<[1], [0], [0], [1], [0, 0, 1, 1], [], []>} : vector<32x128xbf16>, vector<128x128xbf16>, vector<32x128xf32> -> vector<32x128xf32>
    %44 = arith.addf %40, %43 : vector<32x128xf32>
    %c0_22 = arith.constant 0 : index
    %c0_23 = arith.constant 0 : index
    %c0_24 = arith.constant 0 : index
    %45 = vector.load %arg5[%c0_22, %c0_23, %c0_24] : memref<1x1x128xf32, #tpu.memory_space<vmem>>, vector<1x1x128xf32>
    %46 = vector.shape_cast %45 : vector<1x1x128xf32> to vector<1x128xf32>
    %47 = vector.broadcast %46 : vector<1x128xf32> to vector<32x128xf32>
    %48 = arith.addf %44, %47 : vector<32x128xf32>
    %cst_25 = arith.constant 0.000000e+00 : f32
    %49 = vector.broadcast %cst_25 : f32 to vector<32x128xf32>
    %50 = arith.maximumf %48, %49 : vector<32x128xf32>
    %cst_26 = arith.constant dense<0.000000e+00> : vector<128xf32>
    %51 = vector.multi_reduction <add>, %50, %cst_26 [0] : vector<32x128xf32> to vector<128xf32>
    %52 = vector.shape_cast %51 : vector<128xf32> to vector<1x128xf32>
    %cst_27 = arith.constant 3.200000e+01 : f32
    %53 = vector.broadcast %cst_27 : f32 to vector<1x128xf32>
    %54 = arith.divf %52, %53 : vector<1x128xf32>
    %55 = vector.broadcast %54 : vector<1x128xf32> to vector<32x128xf32>
    %56 = arith.subf %50, %55 : vector<32x128xf32>
    %57 = arith.mulf %56, %56 : vector<32x128xf32>
    %cst_28 = arith.constant dense<0.000000e+00> : vector<128xf32>
    %58 = vector.multi_reduction <add>, %57, %cst_28 [0] : vector<32x128xf32> to vector<128xf32>
    %59 = vector.shape_cast %58 : vector<128xf32> to vector<1x128xf32>
    %cst_29 = arith.constant 3.200000e+01 : f32
    %60 = vector.broadcast %cst_29 : f32 to vector<1x128xf32>
    %61 = arith.divf %59, %60 : vector<1x128xf32>
    %c0_30 = arith.constant 0 : index
    %c0_31 = arith.constant 0 : index
    %c0_32 = arith.constant 0 : index
    %62 = vector.load %arg6[%c0_30, %c0_31, %c0_32] : memref<1x1x128xf32, #tpu.memory_space<vmem>>, vector<1x1x128xf32>
    %63 = vector.shape_cast %62 : vector<1x1x128xf32> to vector<1x128xf32>
    %cst_33 = arith.constant 9.99999974E-6 : f32
    %64 = vector.broadcast %cst_33 : f32 to vector<1x128xf32>
    %65 = arith.addf %61, %64 : vector<1x128xf32>
    %66 = math.rsqrt %65 : vector<1x128xf32>
    %67 = arith.mulf %63, %66 : vector<1x128xf32>
    %68 = vector.broadcast %67 : vector<1x128xf32> to vector<32x128xf32>
    %69 = arith.mulf %56, %68 : vector<32x128xf32>
    %c0_34 = arith.constant 0 : index
    %c0_35 = arith.constant 0 : index
    %c0_36 = arith.constant 0 : index
    %70 = vector.load %arg7[%c0_34, %c0_35, %c0_36] : memref<1x1x128xf32, #tpu.memory_space<vmem>>, vector<1x1x128xf32>
    %71 = vector.shape_cast %70 : vector<1x1x128xf32> to vector<1x128xf32>
    %72 = vector.broadcast %71 : vector<1x128xf32> to vector<32x128xf32>
    %73 = arith.addf %69, %72 : vector<32x128xf32>
    %74 = arith.truncf %73 : vector<32x128xf32> to vector<32x128xbf16>
    %c0_37 = arith.constant 0 : index
    %c0_38 = arith.constant 0 : index
    %75 = vector.load %arg11[%c0_37, %c0_38] : memref<32x128xbf16, #tpu.memory_space<vmem>>, vector<32x128xbf16>
    tpu.vector_store %arg11[%c0_37, %c0_38], %74 {strides = array<i32>} : memref<32x128xbf16, #tpu.memory_space<vmem>>, vector<32x128xbf16>,
    %c1_i32_39 = arith.constant 1 : i32
    %76 = arith.cmpi eq, %arg0, %c1_i32_39 : i32
    %77 = arith.extui %76 : i1 to i32
    %c0_i32_40 = arith.constant 0 : i32
    %78 = arith.cmpi ne, %77, %c0_i32_40 : i32
    scf.if %78 {
      %c0_41 = arith.constant 0 : index
      %c0_42 = arith.constant 0 : index
      %79 = vector.load %arg8[%c0_41, %c0_42] : memref<128x128xbf16, #tpu.memory_space<vmem>>, vector<128x128xbf16>
      %cst_43 = arith.constant dense<0.000000e+00> : vector<32x128xf32>
      %80 = tpu.matmul %74, %79, %cst_43 {dimension_numbers = #tpu.dot_dimension_numbers<[1], [0], [0], [1], [0, 0, 1, 1], [], []>} : vector<32x128xbf16>, vector<128x128xbf16>, vector<32x128xf32> -> vector<32x128xf32>
      %c0_44 = arith.constant 0 : index
      %c0_45 = arith.constant 0 : index
      %81 = vector.load %arg9[%c0_44, %c0_45] : memref<1x128xf32, #tpu.memory_space<vmem>>, vector<1x128xf32>
      %82 = vector.broadcast %81 : vector<1x128xf32> to vector<32x128xf32>
      %83 = arith.addf %80, %82 : vector<32x128xf32>
      %c0_46 = arith.constant 0 : index
      %c0_47 = arith.constant 0 : index
      %84 = vector.load %arg10[%c0_46, %c0_47] : memref<32x128xf32, #tpu.memory_space<vmem>>, vector<32x128xf32>
      tpu.vector_store %arg10[%c0_46, %c0_47], %83 {strides = array<i32>} : memref<32x128xf32, #tpu.memory_space<vmem>>, vector<32x128xf32>,
    } else {
    }
    return
  }
  func.func @transform_0(%arg0: i32) -> (i32, i32) {
    %c0_i32 = arith.constant 0 : i32
    %c0_i32_0 = arith.constant 0 : i32
    %c0_i32_1 = arith.constant 0 : i32
    return %c0_i32, %c0_i32_0 : i32, i32
  }
  func.func @transform_1(%arg0: i32) -> (i32, i32) {
    %c0_i32 = arith.constant 0 : i32
    %c0_i32_0 = arith.constant 0 : i32
    %c0_i32_1 = arith.constant 0 : i32
    return %c0_i32, %c0_i32_0 : i32, i32
  }
  func.func @transform_2(%arg0: i32) -> (i32, i32) {
    %c0_i32 = arith.constant 0 : i32
    %c0_i32_0 = arith.constant 0 : i32
    %c0_i32_1 = arith.constant 0 : i32
    return %c0_i32, %c0_i32_0 : i32, i32
  }
  func.func @transform_3(%arg0: i32) -> (i32, i32, i32, i32) {
    %c0_i32 = arith.constant 0 : i32
    %c0_i32_0 = arith.constant 0 : i32
    %c0_i32_1 = arith.constant 0 : i32
    %c0_i32_2 = arith.constant 0 : i32
    return %arg0, %c0_i32, %c0_i32_0, %c0_i32_1 : i32, i32, i32, i32
  }
  func.func @transform_4(%arg0: i32) -> (i32, i32, i32) {
    %c0_i32 = arith.constant 0 : i32
    %c0_i32_0 = arith.constant 0 : i32
    %c0_i32_1 = arith.constant 0 : i32
    return %arg0, %c0_i32, %c0_i32_0 : i32, i32, i32
  }
  func.func @transform_5(%arg0: i32) -> (i32, i32, i32) {
    %c0_i32 = arith.constant 0 : i32
    %c0_i32_0 = arith.constant 0 : i32
    %c0_i32_1 = arith.constant 0 : i32
    return %arg0, %c0_i32, %c0_i32_0 : i32, i32, i32
  }
  func.func @transform_6(%arg0: i32) -> (i32, i32, i32) {
    %c0_i32 = arith.constant 0 : i32
    %c0_i32_0 = arith.constant 0 : i32
    %c0_i32_1 = arith.constant 0 : i32
    return %arg0, %c0_i32, %c0_i32_0 : i32, i32, i32
  }
  func.func @transform_7(%arg0: i32) -> (i32, i32) {
    %c0_i32 = arith.constant 0 : i32
    %c0_i32_0 = arith.constant 0 : i32
    %c0_i32_1 = arith.constant 0 : i32
    return %c0_i32, %c0_i32_0 : i32, i32
  }
  func.func @transform_8(%arg0: i32) -> (i32, i32) {
    %c0_i32 = arith.constant 0 : i32
    %c0_i32_0 = arith.constant 0 : i32
    %c0_i32_1 = arith.constant 0 : i32
    return %c0_i32, %c0_i32_0 : i32, i32
  }
  func.func @transform_9(%arg0: i32) -> (i32, i32) {
    %c0_i32 = arith.constant 0 : i32
    %c0_i32_0 = arith.constant 0 : i32
    %c0_i32_1 = arith.constant 0 : i32
    return %c0_i32, %c0_i32_0 : i32, i32
  }
}

</mosaic_0001>

<llo_original>
// kernel: cnn_forward.1
$region0: #{cnn_forward.1}
  #allocation0 [shape = 'u32[]', space=smem, size = 0x4, offset = 0x4, fixed_abs, tag = 'smem constant byte address 0x4 - core index']
  #allocation1 [shape = 'u32[144,128]{1,0:T(1,128)}', space=vmem, size = 0x12000, scoped, tag = 'internal scratch']
  #allocation2 [shape = 'bf16[32,128]{1,0:T(8,128)(2,1)}', space=vmem, size = 0x2000, scoped, tag = 'scratch operand']
  %s0 = inlined_call_operand.vmem [shape: bf16[32,16], index: 0, kind: input, shape index: {}]
  %s1 = inlined_call_operand.vmem [shape: bf16[16,128], index: 1, kind: input, shape index: {}]
  %s2 = inlined_call_operand.vmem [shape: f32[1,128], index: 2, kind: input, shape index: {}]
  %s3 = inlined_call_operand.hbm [shape: bf16[2,3,128,128], index: 3, kind: input, shape index: {}]
  %s4 = inlined_call_operand.vmem [shape: f32[2,1,128], index: 4, kind: input, shape index: {}]
  %s5 = inlined_call_operand.vmem [shape: f32[2,1,128], index: 5, kind: input, shape index: {}]
  %s6 = inlined_call_operand.vmem [shape: f32[2,1,128], index: 6, kind: input, shape index: {}]
  %s7 = inlined_call_operand.vmem [shape: bf16[128,128], index: 7, kind: input, shape index: {}]
  %s8 = inlined_call_operand.vmem [shape: f32[1,128], index: 8, kind: input, shape index: {}]
  %s9 = inlined_call_operand.vmem [shape: f32[32,128], index: 9, kind: output, shape index: {}]
  %s10 = sld [smem:[#allocation0]]
  $region81: #{cnn_forward.1} parent=0
    _
  %s12 = ssub.s32 1, %s10
  %s13 = scalar_select 0, %s12, %s10
  $region1: #{cnn_forward.1} parent=0
    #allocation3 [shape = 'u8[196608]{0}', space=vmem, size = 0x30000, scoped, tag = 'input window, operand 3']
    #allocation4 [shape = 's32[2]{0}', space=sflag, size = 0x8, scoped, tag = 'scoped memory for cnn_forward.1']
    %14 = vsyncpa [#allocation4], 0
    %s15 = scalar_lea.sflag [#allocation4], 1
    %16 = vsyncpa %s15, 0
    loop: start=0, step=1, limit=4
    $region2: #{cnn_forward.1} parent=1 // loop_pre_header
      _
    $region3: #{cnn_forward.1} parent=1 // loop_header
      %s18 = sphi 0, %s22
      %p19 = scmp.ge.s32.totalorder %s18, 4
      %s26 = sphi 0, %s26
      %s28 = sphi 0, %s26
      %s29 = sphi 0, %s28
      %s43 = sphi 0, %s29
      %s47 = sphi 0, %s47
      %s49 = sphi 0, %s47
      %s50 = sphi 0, %s49
      %s64 = sphi 0, %s50
      %s68 = sphi 0, %s68
      %s70 = sphi 0, %s68
      %s71 = sphi 0, %s70
      %s85 = sphi 0, %s71
      %s91 = sphi 0, %s93
      %s94 = sphi 0, %s91
      %s95 = sphi 0, %s94
      %s111 = sphi 0, %s95
      %s117 = sphi 0, %s119
      %s120 = sphi 0, %s117
      %s121 = sphi 0, %s120
      %s137 = sphi 0, %s121
      %s143 = sphi 0, %s145
      %s146 = sphi 0, %s143
      %s147 = sphi 0, %s146
      %s163 = sphi 0, %s147
      %s169 = sphi 0, %s171
      %s172 = sphi 0, %s169
      %s173 = sphi 0, %s172
      %s189 = sphi 0, %s173
      %s193 = sphi 0, %s193
      %s195 = sphi 0, %s193
      %s196 = sphi 0, %s195
      %s210 = sphi 0, %s196
      %s214 = sphi 0, %s214
      %s216 = sphi 0, %s214
      %s217 = sphi 0, %s216
      %s231 = sphi 0, %s217
      %s235 = sphi 0, %s235
      %s237 = sphi 0, %s235
      %s238 = sphi 0, %s237
      %s252 = sphi 0, %s238
    $region4: #{cnn_forward.1} parent=1 // loop_header_branch
      %21 = sbr.rel (%p19) target = $region8
    $region5: #{cnn_forward.1} parent=1 // loop_body
      %s23 = ssub.s32 %s18, 1
      %s24 = ssub.s32 %s18, 2
      %s25 = sadd.s32 %s18, 1
      %s27 = sadd.s32 %s26, 1
      %p30 = scmp.eq.s32.totalorder %s18, 1
      %p31 = scmp.ne.s32.totalorder %s26, %s28
      %p32 = scmp.eq.s32.totalorder %s18, 0
      %p33 = por %p31, %p32
      %p34 = scmp.ne.s32.totalorder %s26, %s28
      %p35 = scmp.eq.s32.totalorder %s23, 1
      %p36 = por %p34, %p35
      %p37 = scmp.ne.s32.totalorder %s28, %s29
      %p38 = scmp.eq.s32.totalorder %s23, 0
      %p39 = por %p37, %p38
      %p40 = scmp.ne.s32.totalorder %s28, %s29
      %p41 = scmp.eq.s32.totalorder %s24, 1
      %p42 = por %p40, %p41
      %p44 = scmp.ne.s32.totalorder %s29, %s43
      %p45 = scmp.eq.s32.totalorder %s24, 0
      %p46 = por %p44, %p45
      %s48 = sadd.s32 %s47, 1
      %p51 = scmp.eq.s32.totalorder %s18, 1
      %p52 = scmp.ne.s32.totalorder %s47, %s49
      %p53 = scmp.eq.s32.totalorder %s18, 0
      %p54 = por %p52, %p53
      %p55 = scmp.ne.s32.totalorder %s47, %s49
      %p56 = scmp.eq.s32.totalorder %s23, 1
      %p57 = por %p55, %p56
      %p58 = scmp.ne.s32.totalorder %s49, %s50
      %p59 = scmp.eq.s32.totalorder %s23, 0
      %p60 = por %p58, %p59
      %p61 = scmp.ne.s32.totalorder %s49, %s50
      %p62 = scmp.eq.s32.totalorder %s24, 1
      %p63 = por %p61, %p62
      %p65 = scmp.ne.s32.totalorder %s50, %s64
      %p66 = scmp.eq.s32.totalorder %s24, 0
      %p67 = por %p65, %p66
      %s69 = sadd.s32 %s68, 1
      %p72 = scmp.eq.s32.totalorder %s18, 1
      %p73 = scmp.ne.s32.totalorder %s68, %s70
      %p74 = scmp.eq.s32.totalorder %s18, 0
      %p75 = por %p73, %p74
      %p76 = scmp.ne.s32.totalorder %s68, %s70
      %p77 = scmp.eq.s32.totalorder %s23, 1
      %p78 = por %p76, %p77
      %p79 = scmp.ne.s32.totalorder %s70, %s71
      %p80 = scmp.eq.s32.totalorder %s23, 0
      %p81 = por %p79, %p80
      %p82 = scmp.ne.s32.totalorder %s70, %s71
      %p83 = scmp.eq.s32.totalorder %s24, 1
      %p84 = por %p82, %p83
      %p86 = scmp.ne.s32.totalorder %s71, %s85
      %p87 = scmp.eq.s32.totalorder %s24, 0
      %p88 = por %p86, %p87
      %s89 = ssub.s32 %s18, %s25
      %p90 = scmp.eq.s32.totalorder %s89, 0
      %s92 = sadd.s32 %s91, 1
      %s93 = scalar_select %p90, %s91, %s92
      %p96 = pneg %p90
      %p97 = scmp.eq.s32.totalorder %s18, 1
      %p98 = por %p96, %p97
      %p99 = scmp.ne.s32.totalorder %s91, %s94
      %p100 = scmp.eq.s32.totalorder %s18, 0
      %p101 = por %p99, %p100
      %p102 = scmp.ne.s32.totalorder %s91, %s94
      %p103 = scmp.eq.s32.totalorder %s23, 1
      %p104 = por %p102, %p103
      %p105 = scmp.ne.s32.totalorder %s94, %s95
      %p106 = scmp.eq.s32.totalorder %s23, 0
      %p107 = por %p105, %p106
      %p108 = scmp.ne.s32.totalorder %s94, %s95
      %p109 = scmp.eq.s32.totalorder %s24, 1
      %p110 = por %p108, %p109
      %p112 = scmp.ne.s32.totalorder %s95, %s111
      %p113 = scmp.eq.s32.totalorder %s24, 0
      %p114 = por %p112, %p113
      %s115 = ssub.s32 %s18, %s25
      %p116 = scmp.eq.s32.totalorder %s115, 0
      %s118 = sadd.s32 %s117, 1
      %s119 = scalar_select %p116, %s117, %s118
      %p122 = pneg %p116
      %p123 = scmp.eq.s32.totalorder %s18, 1
      %p124 = por %p122, %p123
      %p125 = scmp.ne.s32.totalorder %s117, %s120
      %p126 = scmp.eq.s32.totalorder %s18, 0
      %p127 = por %p125, %p126
      %p128 = scmp.ne.s32.totalorder %s117, %s120
      %p129 = scmp.eq.s32.totalorder %s23, 1
      %p130 = por %p128, %p129
      %p131 = scmp.ne.s32.totalorder %s120, %s121
      %p132 = scmp.eq.s32.totalorder %s23, 0
      %p133 = por %p131, %p132
      %p134 = scmp.ne.s32.totalorder %s120, %s121
      %p135 = scmp.eq.s32.totalorder %s24, 1
      %p136 = por %p134, %p135
      %p138 = scmp.ne.s32.totalorder %s121, %s137
      %p139 = scmp.eq.s32.totalorder %s24, 0
      %p140 = por %p138, %p139
      %s141 = ssub.s32 %s18, %s25
      %p142 = scmp.eq.s32.totalorder %s141, 0
      %s144 = sadd.s32 %s143, 1
      %s145 = scalar_select %p142, %s143, %s144
      %p148 = pneg %p142
      %p149 = scmp.eq.s32.totalorder %s18, 1
      %p150 = por %p148, %p149
      %p151 = scmp.ne.s32.totalorder %s143, %s146
      %p152 = scmp.eq.s32.totalorder %s18, 0
      %p153 = por %p151, %p152
      %p154 = scmp.ne.s32.totalorder %s143, %s146
      %p155 = scmp.eq.s32.totalorder %s23, 1
      %p156 = por %p154, %p155
      %p157 = scmp.ne.s32.totalorder %s146, %s147
      %p158 = scmp.eq.s32.totalorder %s23, 0
      %p159 = por %p157, %p158
      %p160 = scmp.ne.s32.totalorder %s146, %s147
      %p161 = scmp.eq.s32.totalorder %s24, 1
      %p162 = por %p160, %p161
      %p164 = scmp.ne.s32.totalorder %s147, %s163
      %p165 = scmp.eq.s32.totalorder %s24, 0
      %p166 = por %p164, %p165
      %s167 = ssub.s32 %s18, %s25
      %p168 = scmp.eq.s32.totalorder %s167, 0
      %s170 = sadd.s32 %s169, 1
      %s171 = scalar_select %p168, %s169, %s170
      %p174 = pneg %p168
      %p175 = scmp.eq.s32.totalorder %s18, 1
      %p176 = por %p174, %p175
      %p177 = scmp.ne.s32.totalorder %s169, %s172
      %p178 = scmp.eq.s32.totalorder %s18, 0
      %p179 = por %p177, %p178
      %p180 = scmp.ne.s32.totalorder %s169, %s172
      %p181 = scmp.eq.s32.totalorder %s23, 1
      %p182 = por %p180, %p181
      %p183 = scmp.ne.s32.totalorder %s172, %s173
      %p184 = scmp.eq.s32.totalorder %s23, 0
      %p185 = por %p183, %p184
      %p186 = scmp.ne.s32.totalorder %s172, %s173
      %p187 = scmp.eq.s32.totalorder %s24, 1
      %p188 = por %p186, %p187
      %p190 = scmp.ne.s32.totalorder %s173, %s189
      %p191 = scmp.eq.s32.totalorder %s24, 0
      %p192 = por %p190, %p191
      %s194 = sadd.s32 %s193, 1
      %p197 = scmp.eq.s32.totalorder %s18, 1
      %p198 = scmp.ne.s32.totalorder %s193, %s195
      %p199 = scmp.eq.s32.totalorder %s18, 0
      %p200 = por %p198, %p199
      %p201 = scmp.ne.s32.totalorder %s193, %s195
      %p202 = scmp.eq.s32.totalorder %s23, 1
      %p203 = por %p201, %p202
      %p204 = scmp.ne.s32.totalorder %s195, %s196
      %p205 = scmp.eq.s32.totalorder %s23, 0
      %p206 = por %p204, %p205
      %p207 = scmp.ne.s32.totalorder %s195, %s196
      %p208 = scmp.eq.s32.totalorder %s24, 1
      %p209 = por %p207, %p208
      %p211 = scmp.ne.s32.totalorder %s196, %s210
      %p212 = scmp.eq.s32.totalorder %s24, 0
      %p213 = por %p211, %p212
      %s215 = sadd.s32 %s214, 1
      %p218 = scmp.eq.s32.totalorder %s18, 1
      %p219 = scmp.ne.s32.totalorder %s214, %s216
      %p220 = scmp.eq.s32.totalorder %s18, 0
      %p221 = por %p219, %p220
      %p222 = scmp.ne.s32.totalorder %s214, %s216
      %p223 = scmp.eq.s32.totalorder %s23, 1
      %p224 = por %p222, %p223
      %p225 = scmp.ne.s32.totalorder %s216, %s217
      %p226 = scmp.eq.s32.totalorder %s23, 0
      %p227 = por %p225, %p226
      %p228 = scmp.ne.s32.totalorder %s216, %s217
      %p229 = scmp.eq.s32.totalorder %s24, 1
      %p230 = por %p228, %p229
      %p232 = scmp.ne.s32.totalorder %s217, %s231
      %p233 = scmp.eq.s32.totalorder %s24, 0
      %p234 = por %p232, %p233
      %s236 = sadd.s32 %s235, 1
      %p239 = scmp.eq.s32.totalorder %s18, 1
      %p240 = scmp.ne.s32.totalorder %s235, %s237
      %p241 = scmp.eq.s32.totalorder %s18, 0
      %p242 = por %p240, %p241
      %p243 = scmp.ne.s32.totalorder %s235, %s237
      %p244 = scmp.eq.s32.totalorder %s23, 1
      %p245 = por %p243, %p244
      %p246 = scmp.ne.s32.totalorder %s237, %s238
      %p247 = scmp.eq.s32.totalorder %s23, 0
      %p248 = por %p246, %p247
      %p249 = scmp.ne.s32.totalorder %s237, %s238
      %p250 = scmp.eq.s32.totalorder %s24, 1
      %p251 = por %p249, %p250
      %p253 = scmp.ne.s32.totalorder %s238, %s252
      %p254 = scmp.eq.s32.totalorder %s24, 0
      %p255 = por %p253, %p254
      %p256 = scmp.le.s32.totalorder 1, %s18
      %p257 = scmp.lt.s32.totalorder %s18, 3
      %p258 = pnand %p256, %p257
      %p259 = pneg %p258
      // Predicated region
      $region9: #{cnn_forward.1} parent=5 // pred_check
        _
      $region10: #{cnn_forward.1} parent=5 // pred_check_branch
        %261 = sbr.rel (%p258) target = $region12
      $region11: #{cnn_forward.1} parent=5 // pred_region
        %s262 = ssub.s32 %s18, 1
        // Predicated region
        $region13: #{cnn_forward.1} parent=11 // pred_check
          %p263 = pneg %p39
        $region14: #{cnn_forward.1} parent=11 // pred_check_branch
          %265 = sbr.rel (%p263) target = $region16
        $region15: #{cnn_forward.1} parent=11 // pred_region
          _
        $region16: #{cnn_forward.1} parent=11 // pred_fallthru
          _
        // Predicated region
        $region17: #{cnn_forward.1} parent=11 // pred_check
          %p266 = pneg %p60
        $region18: #{cnn_forward.1} parent=11 // pred_check_branch
          %268 = sbr.rel (%p266) target = $region20
        $region19: #{cnn_forward.1} parent=11 // pred_region
          _
        $region20: #{cnn_forward.1} parent=11 // pred_fallthru
          _
        // Predicated region
        $region21: #{cnn_forward.1} parent=11 // pred_check
          %p269 = pneg %p81
        $region22: #{cnn_forward.1} parent=11 // pred_check_branch
          %271 = sbr.rel (%p269) target = $region24
        $region23: #{cnn_forward.1} parent=11 // pred_region
          _
        $region24: #{cnn_forward.1} parent=11 // pred_fallthru
          _
        // Predicated region
        $region25: #{cnn_forward.1} parent=11 // pred_check
          %p272 = pneg %p206
        $region26: #{cnn_forward.1} parent=11 // pred_check_branch
          %274 = sbr.rel (%p272) target = $region28
        $region27: #{cnn_forward.1} parent=11 // pred_region
          _
        $region28: #{cnn_forward.1} parent=11 // pred_fallthru
          _
        // Predicated region
        $region29: #{cnn_forward.1} parent=11 // pred_check
          %p275 = pneg %p227
        $region30: #{cnn_forward.1} parent=11 // pred_check_branch
          %277 = sbr.rel (%p275) target = $region32
        $region31: #{cnn_forward.1} parent=11 // pred_region
          _
        $region32: #{cnn_forward.1} parent=11 // pred_fallthru
          _
      $region12: #{cnn_forward.1} parent=5 // pred_fallthru
        _
      %p278 = scmp.lt.s32.totalorder %s18, 2
      // Predicated region
      $region33: #{cnn_forward.1} parent=5 // pred_check
        %p279 = pneg %p278
      $region34: #{cnn_forward.1} parent=5 // pred_check_branch
        %281 = sbr.rel (%p279) target = $region36
      $region35: #{cnn_forward.1} parent=5 // pred_region
        // Predicated region
        $region37: #{cnn_forward.1} parent=35 // pred_check
          %p282 = pneg %p101
        $region38: #{cnn_forward.1} parent=35 // pred_check_branch
          %284 = sbr.rel (%p282) target = $region40
        $region39: #{cnn_forward.1} parent=35 // pred_region
          %s285 = sand.u32 %s91, 1
          %s286 = scalar_lea.sflag [#allocation4], %s285
          %s287 = sand.u32 %s91, 1
          %s288 = smul.addr %s287, 192
          %s289 = scalar_lea.vmem [#allocation3], %s288
          %s291 = ssub.s32 3072, 3072
          %292 = vsyncadd %s286, %s291
          %s293 = smul.addr %s18, 48
          %s294 = smul.addr %s293, 64
          %s295 = scalar_lea.hbm %s3, %s294
          %s296 = sshll.u32 %s289, 4
          %s297 = int_to_ptr.vmem [resolvable:$true] %s296
          %302 = dma.hbm_to_vmem [thread:$0]  %s295, 3072, %s297, %s286, 64, 64, 4
        $region40: #{cnn_forward.1} parent=35 // pred_fallthru
          _
        // Predicated region
        $region41: #{cnn_forward.1} parent=35 // pred_check
          %p303 = pneg %p127
        $region42: #{cnn_forward.1} parent=35 // pred_check_branch
          %305 = sbr.rel (%p303) target = $region44
        $region43: #{cnn_forward.1} parent=35 // pred_region
          %p306 = scmp.lt.s32.totalorder %s18, 1
          %s307 = scalar_select %p306, %s18, 1
          %s308 = scalar_lea.vmem %s4, %s307
        $region44: #{cnn_forward.1} parent=35 // pred_fallthru
          _
        // Predicated region
        $region45: #{cnn_forward.1} parent=35 // pred_check
          %p309 = pneg %p153
        $region46: #{cnn_forward.1} parent=35 // pred_check_branch
          %311 = sbr.rel (%p309) target = $region48
        $region47: #{cnn_forward.1} parent=35 // pred_region
          %p312 = scmp.lt.s32.totalorder %s18, 1
          %s313 = scalar_select %p312, %s18, 1
          %s314 = scalar_lea.vmem %s5, %s313
        $region48: #{cnn_forward.1} parent=35 // pred_fallthru
          _
        // Predicated region
        $region49: #{cnn_forward.1} parent=35 // pred_check
          %p315 = pneg %p179
        $region50: #{cnn_forward.1} parent=35 // pred_check_branch
          %317 = sbr.rel (%p315) target = $region52
        $region51: #{cnn_forward.1} parent=35 // pred_region
          %p318 = scmp.lt.s32.totalorder %s18, 1
          %s319 = scalar_select %p318, %s18, 1
          %s320 = scalar_lea.vmem %s6, %s319
        $region52: #{cnn_forward.1} parent=35 // pred_fallthru
          _
      $region36: #{cnn_forward.1} parent=5 // pred_fallthru
        _
      %p321 = scmp.le.s32.totalorder 1, %s18
      %p322 = scmp.lt.s32.totalorder %s18, 3
      %p323 = pnand %p321, %p322
      %p324 = pneg %p323
      // Predicated region
      $region53: #{cnn_forward.1} parent=5 // pred_check
        _
      $region54: #{cnn_forward.1} parent=5 // pred_check_branch
        %326 = sbr.rel (%p323) target = $region56
      $region55: #{cnn_forward.1} parent=5 // pred_region
        %s327 = ssub.s32 %s18, 1
        %s328 = sand.u32 %s94, 1
        %s329 = scalar_lea.sflag [#allocation4], %s328
        %s330 = sand.u32 %s94, 1
        %s331 = smul.addr %s330, 192
        %s332 = scalar_lea.vmem [#allocation3], %s331
        // Predicated region
        $region57: #{cnn_forward.1} parent=55 // pred_check
          %p333 = pneg %p107
        $region58: #{cnn_forward.1} parent=55 // pred_check_branch
          %335 = sbr.rel (%p333) target = $region60
        $region59: #{cnn_forward.1} parent=55 // pred_region
          %336 = dma.done %s329, 3072
        $region60: #{cnn_forward.1} parent=55 // pred_fallthru
          _
        %p337 = pneg %p39
        %p338 = pneg %p36
        %p339 = pneg %p60
        %p340 = pneg %p57
        %p341 = pneg %p81
        %p342 = pneg %p78
        %s343 = sand.u32 %s94, 1
        %s344 = scalar_lea.sflag [#allocation4], %s343
        %s345 = sand.u32 %s94, 1
        %s346 = smul.addr %s345, 192
        %s347 = scalar_lea.vmem [#allocation3], %s346
        %p348 = pneg %p107
        %p349 = pneg %p104
        %p350 = scmp.lt.s32.totalorder %s23, 1
        %s351 = scalar_select %p350, %s23, 1
        %s352 = scalar_lea.vmem %s4, %s351
        %p353 = pneg %p133
        %p354 = pneg %p130
        %p355 = scmp.lt.s32.totalorder %s23, 1
        %s356 = scalar_select %p355, %s23, 1
        %s357 = scalar_lea.vmem %s5, %s356
        %p358 = pneg %p159
        %p359 = pneg %p156
        %p360 = scmp.lt.s32.totalorder %s23, 1
        %s361 = scalar_select %p360, %s23, 1
        %s362 = scalar_lea.vmem %s6, %s361
        %p363 = pneg %p185
        %p364 = pneg %p182
        %p365 = pneg %p206
        %p366 = pneg %p203
        %p367 = pneg %p227
        %p368 = pneg %p224
        %p369 = pneg %p248
        %p370 = pneg %p245
        %p371 = scmp.lt.s32.totalorder %s23, 1
        %s372 = scalar_select %p371, %s23, 1
        %s373 = scalar_lea.vmem %s4, %s372
        %p374 = scmp.lt.s32.totalorder %s23, 1
        %s375 = scalar_select %p374, %s23, 1
        %s376 = scalar_lea.vmem %s5, %s375
        %p377 = scmp.lt.s32.totalorder %s23, 1
        %s378 = scalar_select %p377, %s23, 1
        %s379 = scalar_lea.vmem %s6, %s378
        %p381 = scmp.eq.s32.totalorder %s23, 0
        // Predicated region
        $region61: #{cnn_forward.1} parent=55 // pred_check
          %p382 = pneg %p381
        $region62: #{cnn_forward.1} parent=55 // pred_check_branch
          %384 = sbr.rel (%p382) target = $region64
        $region63: #{cnn_forward.1} parent=55 // pred_region
          %v385 = vld [vmem:[%s0] sm:$0xf]
          %v386 = vld [vmem:[%s0 + $0x4] sm:$0xf]
          %v387 = vld [vmem:[%s0 + $0x8] sm:$0xf]
          %v388 = vld [vmem:[%s0 + $0xc] sm:$0xf]
          %v389 = vld [vmem:[%s1] sm:$0xf]
          %v390 = vld [vmem:[%s1 + $0x4] sm:$0xf]
          %v391 = vld [vmem:[%s2] sm:$0x1]
          %v393 = vlaneseq
          %v394 = vshrl.u32 %v393, 7
          %v395 = vsub.s32 0, %v394
          %v396 = vrot.slane %v391, %v395
          %v402 = vunpack.c.l.b16 %v385
          %v403 = vunpack.c.l.b16 %v386
          %v404 = vunpack.c.l.b16 %v387
          %v405 = vunpack.c.l.b16 %v388
          %v406 = vpack.c.b16 %v403, %v402
          %v407 = vpack.c.b16 %v405, %v404
          %v410 = vunpack.c.l.b16 %v389
          %v411 = vunpack.c.l.b16 %v390
          %v412 = vpack.c.b16 %v411, %v410
          %vm414 = vcmask 130048
          %v416 = vsel %vm414, %v406, 0
          %v419 = vsel %vm414, %v407, 0
          %421 = vmatprep.subr.bf16.mxu0 0
          %422 = vmatpush1.bf16.msra.mxu0 0
          %423 = vmatprep.subr.bf16.mxu0 0
          %424 = vmatpush1.bf16.msra.mxu0 0
          %425 = vmatprep.subr.bf16.mxu0 0
          %426 = vmatpush1.bf16.msra.mxu0 0
          %427 = vmatprep.subr.bf16.mxu0 0
          %428 = vmatpush1.bf16.msra.mxu0 0
          %429 = vmatprep.subr.bf16.mxu0 0
          %430 = vmatpush1.bf16.msra.mxu0 0
          %431 = vmatprep.subr.bf16.mxu0 0
          %432 = vmatpush1.bf16.msra.mxu0 0
          %433 = vmatprep.subr.bf16.mxu0 0
          %434 = vmatpush1.bf16.msra.mxu0 0
          %435 = vmatprep.subr.bf16.mxu0 0
          %436 = vmatpush1.bf16.msra.mxu0 %v412
          %437 = vmatprep.subr.bf16.mxu0 0
          %438 = vmatpush2.bf16.msra.mxu0 0
          %439 = vmatprep.subr.bf16.mxu0 0
          %440 = vmatpush2.bf16.msra.mxu0 0
          %441 = vmatprep.subr.bf16.mxu0 0
          %442 = vmatpush2.bf16.msra.mxu0 0
          %443 = vmatprep.subr.bf16.mxu0 0
          %444 = vmatpush2.bf16.msra.mxu0 0
          %445 = vmatprep.subr.bf16.mxu0 0
          %446 = vmatpush2.bf16.msra.mxu0 0
          %447 = vmatprep.subr.bf16.mxu0 0
          %448 = vmatpush2.bf16.msra.mxu0 0
          %449 = vmatprep.subr.bf16.mxu0 0
          %450 = vmatpush2.bf16.msra.mxu0 0
          %451 = vmatprep.subr.bf16.mxu0 0
          %452 = vmatpush2.bf16.msra.mxu0 0
          %453 = vmatprep.mubr.bf16.mxu0 0
          %454 = vmatmul.mubr.bf16.gmra.mxu0 %v416
          %v455 = vpop.f32.mrf.mxu0
          %v456 = vadd.f32 %v396, %v455
          %v457 = vpop.f32.mrf.mxu0
          %v458 = vpop.f32.mrf.mxu0
          %v459 = vadd.f32 %v396, %v458
          %v460 = vpop.f32.mrf.mxu0
          %461 = vmatprep.mubr.bf16.mxu0 0
          %462 = vmatmul.mubr.bf16.gmra.mxu0 %v419
          %v463 = vpop.f32.mrf.mxu0
          %v464 = vadd.f32 %v396, %v463
          %v465 = vpop.f32.mrf.mxu0
          %v466 = vpop.f32.mrf.mxu0
          %v467 = vadd.f32 %v396, %v466
          %v468 = vpop.f32.mrf.mxu0
          %469 = vdwg.mxu0
          %v470 = vtanh.pop %v456
          %v471 = vtanh.pop %v459
          %v472 = vtanh.pop %v464
          %v473 = vtanh.pop %v467
          %v474 = vpack.c.bf16 %v471, %v470
          %v475 = vpack.c.bf16 %v473, %v472
          %v478 = vunpack.c.l.b16 %v474
          %v479 = vunpack.c.h.b16 %v474
          %v480 = vunpack.c.l.b16 %v475
          %v481 = vunpack.c.h.b16 %v475
          %v482 = vpack.c.b16 %v478, %v478
          %v483 = vpack.c.b16 %v479, %v479
          %v484 = vpack.c.b16 %v480, %v480
          %v485 = vpack.c.b16 %v481, %v481
          %490 = vst [vmem:[#allocation2] sm:$0xf] %v482
          %491 = vst [vmem:[#allocation2 + $0x4] sm:$0xf] %v483
          %492 = vst [vmem:[#allocation2 + $0x8] sm:$0xf] %v484
          %493 = vst [vmem:[#allocation2 + $0xc] sm:$0xf] %v485
        $region64: #{cnn_forward.1} parent=55 // pred_fallthru
          _
        %v494 = vld [vmem:[#allocation2] sm:$0xf]
        %v495 = vld [vmem:[#allocation2 + $0x4] sm:$0xf]
        %v496 = vld [vmem:[#allocation2 + $0x8] sm:$0xf]
        %v497 = vld [vmem:[#allocation2 + $0xc] sm:$0xf]
        %v498 = vunpack.c.l.bf16 %v494
        %v499 = vunpack.c.l.bf16 %v495
        %v500 = vunpack.c.l.bf16 %v496
        %v501 = vunpack.c.l.bf16 %v497
        %v502 = vlaneseq
        %v503 = vshrl.u32 %v502, 7
        %v504 = vadd.s32 %v503, 8
        %v505 = vadd.s32 %v503, 16
        %v506 = vadd.s32 %v503, 24
        %vm507 = vcmp.lt.s32.totalorder %v503, 0
        %v508 = vsub.s32 0, %v503
        %v509 = vsel %vm507, %v508, %v503
        %v510 = vshrl.u32 %v509, 4
        %v511 = vand.u32 %v509, 15
        %v512 = vsub.s32 0, %v511
        %v513 = vsel %vm507, %v512, %v511
        %vm514 = vcmp.lt.s32.totalorder %v504, 0
        %v515 = vsub.s32 0, %v504
        %v516 = vsel %vm514, %v515, %v504
        %v517 = vshrl.u32 %v516, 4
        %v518 = vand.u32 %v516, 15
        %v519 = vsub.s32 0, %v518
        %v520 = vsel %vm514, %v519, %v518
        %vm521 = vcmp.lt.s32.totalorder %v505, 0
        %v522 = vsub.s32 0, %v505
        %v523 = vsel %vm521, %v522, %v505
        %v524 = vshrl.u32 %v523, 4
        %v525 = vand.u32 %v523, 15
        %v526 = vsub.s32 0, %v525
        %v527 = vsel %vm521, %v526, %v525
        %vm528 = vcmp.lt.s32.totalorder %v506, 0
        %v529 = vsub.s32 0, %v506
        %v530 = vsel %vm528, %v529, %v506
        %v531 = vshrl.u32 %v530, 4
        %v532 = vand.u32 %v530, 15
        %v533 = vsub.s32 0, %v532
        %v534 = vsel %vm528, %v533, %v532
        %vm535 = vcmp.ne.s32.totalorder %v513, 0
        %vm536 = vcmp.ne.s32.totalorder %v520, 0
        %vm537 = vcmp.ne.s32.totalorder %v527, 0
        %vm538 = vcmp.ne.s32.totalorder %v534, 0
        %vm539 = vcmp.lt.s32.totalorder %v513, 0
        %vm540 = vcmp.lt.s32.totalorder %v520, 0
        %vm541 = vcmp.lt.s32.totalorder %v527, 0
        %vm542 = vcmp.lt.s32.totalorder %v534, 0
        %vm543 = vmand %vm539, %vm535
        %vm544 = vmand %vm540, %vm536
        %vm545 = vmand %vm541, %vm537
        %vm546 = vmand %vm542, %vm538
        %v547 = vadd.s32 %v513, 16
        %v548 = vadd.s32 %v520, 16
        %v549 = vadd.s32 %v527, 16
        %v550 = vadd.s32 %v534, 16
        %v551 = vsel %vm543, %v547, %v513
        %v552 = vsel %vm544, %v548, %v520
        %v553 = vsel %vm545, %v549, %v527
        %v554 = vsel %vm546, %v550, %v534
        %vm555 = vcmp.ne.s32.totalorder %v551, 0
        %vm556 = vcmp.ne.s32.totalorder %v552, 0
        %vm557 = vcmp.ne.s32.totalorder %v553, 0
        %vm558 = vcmp.ne.s32.totalorder %v554, 0
        %vm559 = vcmp.ne.s32.totalorder %v551, 15
        %vm560 = vcmp.ne.s32.totalorder %v552, 15
        %vm561 = vcmp.ne.s32.totalorder %v553, 15
        %vm562 = vcmp.ne.s32.totalorder %v554, 15
        %v563 = vrot.slane %v498, 7
        %v564 = vrot.slane %v499, 7
        %v565 = vrot.slane %v500, 7
        %v566 = vrot.slane %v501, 7
        %vm567 = vcmp.lt.s32.totalorder %v503, 1
        %v568 = vsel %vm567, %v565, %v566
        %v569 = vsel %vm567, %v564, %v565
        %v570 = vsel %vm567, %v563, %v564
        %v571 = vsel %vm567, %v566, %v563
        %v572 = vsel %vm555, %v571, 0.0
        %v573 = vsel %vm556, %v570, 0.0
        %v574 = vsel %vm557, %v569, 0.0
        %v575 = vsel %vm558, %v568, 0.0
        %v576 = vpack.c.bf16 %v573, %v572
        %v577 = vpack.c.bf16 %v575, %v574
        %v578 = vrot.slane %v498, 1
        %v579 = vrot.slane %v499, 1
        %v580 = vrot.slane %v500, 1
        %v581 = vrot.slane %v501, 1
        %vm582 = vcmp.lt.s32.totalorder %v503, 7
        %v583 = vsel %vm582, %v580, %v581
        %v584 = vsel %vm582, %v579, %v580
        %v585 = vsel %vm582, %v578, %v579
        %v586 = vsel %vm582, %v581, %v578
        %v587 = vsel %vm559, %v585, 0.0
        %v588 = vsel %vm560, %v584, 0.0
        %v589 = vsel %vm561, %v583, 0.0
        %v590 = vsel %vm562, %v586, 0.0
        %v591 = vpack.c.bf16 %v588, %v587
        %v592 = vpack.c.bf16 %v590, %v589
        %v593 = vld [vmem:[%s332] sm:$0xf]
        %v594 = vld [vmem:[%s332 + $0x4] sm:$0xf]
        %v595 = vld [vmem:[%s332 + $0x8] sm:$0xf]
        %v596 = vld [vmem:[%s332 + $0xc] sm:$0xf]
        %v597 = vld [vmem:[%s332 + $0x10] sm:$0xf]
        %v598 = vld [vmem:[%s332 + $0x14] sm:$0xf]
        %v599 = vld [vmem:[%s332 + $0x18] sm:$0xf]
        %v600 = vld [vmem:[%s332 + $0x1c] sm:$0xf]
        %v601 = vld [vmem:[%s332 + $0x20] sm:$0xf]
        %v602 = vld [vmem:[%s332 + $0x24] sm:$0xf]
        %v603 = vld [vmem:[%s332 + $0x28] sm:$0xf]
        %v604 = vld [vmem:[%s332 + $0x2c] sm:$0xf]
        %v605 = vld [vmem:[%s332 + $0x30] sm:$0xf]
        %v606 = vld [vmem:[%s332 + $0x34] sm:$0xf]
        %v607 = vld [vmem:[%s332 + $0x38] sm:$0xf]
        %v608 = vld [vmem:[%s332 + $0x3c] sm:$0xf]
        %s609 = scalar_lea.vmem %s332, 64 [#allocation3]
        %v610 = vld [vmem:[%s609] sm:$0xf]
        %v611 = vld [vmem:[%s609 + $0x4] sm:$0xf]
        %v612 = vld [vmem:[%s609 + $0x8] sm:$0xf]
        %v613 = vld [vmem:[%s609 + $0xc] sm:$0xf]
        %v614 = vld [vmem:[%s609 + $0x10] sm:$0xf]
        %v615 = vld [vmem:[%s609 + $0x14] sm:$0xf]
        %v616 = vld [vmem:[%s609 + $0x18] sm:$0xf]
        %v617 = vld [vmem:[%s609 + $0x1c] sm:$0xf]
        %v618 = vld [vmem:[%s609 + $0x20] sm:$0xf]
        %v619 = vld [vmem:[%s609 + $0x24] sm:$0xf]
        %v620 = vld [vmem:[%s609 + $0x28] sm:$0xf]
        %v621 = vld [vmem:[%s609 + $0x2c] sm:$0xf]
        %v622 = vld [vmem:[%s609 + $0x30] sm:$0xf]
        %v623 = vld [vmem:[%s609 + $0x34] sm:$0xf]
        %v624 = vld [vmem:[%s609 + $0x38] sm:$0xf]
        %v625 = vld [vmem:[%s609 + $0x3c] sm:$0xf]
        %v630 = vunpack.c.l.b16 %v494
        %v631 = vunpack.c.l.b16 %v495
        %v632 = vunpack.c.l.b16 %v496
        %v633 = vunpack.c.l.b16 %v497
        %v634 = vpack.c.b16 %v631, %v630
        %v635 = vpack.c.b16 %v633, %v632
        %v654 = vunpack.c.l.b16 %v610
        %v655 = vunpack.c.l.b16 %v611
        %v656 = vunpack.c.l.b16 %v612
        %v657 = vunpack.c.l.b16 %v613
        %v658 = vunpack.c.l.b16 %v614
        %v659 = vunpack.c.l.b16 %v615
        %v660 = vunpack.c.l.b16 %v616
        %v661 = vunpack.c.l.b16 %v617
        %v662 = vunpack.c.l.b16 %v618
        %v663 = vunpack.c.l.b16 %v619
        %v664 = vunpack.c.l.b16 %v620
        %v665 = vunpack.c.l.b16 %v621
        %v666 = vunpack.c.l.b16 %v622
        %v667 = vunpack.c.l.b16 %v623
        %v668 = vunpack.c.l.b16 %v624
        %v669 = vunpack.c.l.b16 %v625
        %v670 = vpack.c.b16 %v655, %v654
        %v671 = vpack.c.b16 %v657, %v656
        %v672 = vpack.c.b16 %v659, %v658
        %v673 = vpack.c.b16 %v661, %v660
        %v674 = vpack.c.b16 %v663, %v662
        %v675 = vpack.c.b16 %v665, %v664
        %v676 = vpack.c.b16 %v667, %v666
        %v677 = vpack.c.b16 %v669, %v668
        %686 = vmatprep.subr.bf16.mxu0 0
        %687 = vmatpush1.bf16.msra.mxu0 %v677
        %688 = vmatprep.subr.bf16.mxu0 0
        %689 = vmatpush1.bf16.msra.mxu0 %v676
        %690 = vmatprep.subr.bf16.mxu0 0
        %691 = vmatpush1.bf16.msra.mxu0 %v675
        %692 = vmatprep.subr.bf16.mxu0 0
        %693 = vmatpush1.bf16.msra.mxu0 %v674
        %694 = vmatprep.subr.bf16.mxu0 0
        %695 = vmatpush1.bf16.msra.mxu0 %v673
        %696 = vmatprep.subr.bf16.mxu0 0
        %697 = vmatpush1.bf16.msra.mxu0 %v672
        %698 = vmatprep.subr.bf16.mxu0 0
        %699 = vmatpush1.bf16.msra.mxu0 %v671
        %700 = vmatprep.subr.bf16.mxu0 0
        %701 = vmatpush1.bf16.msra.mxu0 %v670
        %702 = vmatprep.subr.bf16.mxu0 0
        %703 = vmatpush2.bf16.msra.mxu0 0
        %704 = vmatprep.subr.bf16.mxu0 0
        %705 = vmatpush2.bf16.msra.mxu0 0
        %706 = vmatprep.subr.bf16.mxu0 0
        %707 = vmatpush2.bf16.msra.mxu0 0
        %708 = vmatprep.subr.bf16.mxu0 0
        %709 = vmatpush2.bf16.msra.mxu0 0
        %710 = vmatprep.subr.bf16.mxu0 0
        %711 = vmatpush2.bf16.msra.mxu0 0
        %712 = vmatprep.subr.bf16.mxu0 0
        %713 = vmatpush2.bf16.msra.mxu0 0
        %714 = vmatprep.subr.bf16.mxu0 0
        %715 = vmatpush2.bf16.msra.mxu0 0
        %716 = vmatprep.subr.bf16.mxu0 0
        %717 = vmatpush2.bf16.msra.mxu0 0
        %718 = vmatprep.mubr.bf16.mxu0 0
        %719 = vmatmul.mubr.bf16.gmra.mxu0 %v634
        %v720 = vpop.f32.mrf.mxu0
        %v721 = vadd.f32 0.0, %v720
        %v722 = vpop.f32.mrf.mxu0
        %v723 = vpop.f32.mrf.mxu0
        %v724 = vadd.f32 0.0, %v723
        %v725 = vpop.f32.mrf.mxu0
        %726 = vmatprep.mubr.bf16.mxu0 0
        %727 = vmatmul.mubr.bf16.gmra.mxu0 %v635
        %v728 = vpop.f32.mrf.mxu0
        %v729 = vadd.f32 0.0, %v728
        %v730 = vpop.f32.mrf.mxu0
        %v731 = vpop.f32.mrf.mxu0
        %v732 = vadd.f32 0.0, %v731
        %v733 = vpop.f32.mrf.mxu0
        %734 = vdwg.mxu0
        %v751 = vunpack.c.l.b16 %v593
        %v752 = vunpack.c.l.b16 %v594
        %v753 = vunpack.c.l.b16 %v595
        %v754 = vunpack.c.l.b16 %v596
        %v755 = vunpack.c.l.b16 %v597
        %v756 = vunpack.c.l.b16 %v598
        %v757 = vunpack.c.l.b16 %v599
        %v758 = vunpack.c.l.b16 %v600
        %v759 = vunpack.c.l.b16 %v601
        %v760 = vunpack.c.l.b16 %v602
        %v761 = vunpack.c.l.b16 %v603
        %v762 = vunpack.c.l.b16 %v604
        %v763 = vunpack.c.l.b16 %v605
        %v764 = vunpack.c.l.b16 %v606
        %v765 = vunpack.c.l.b16 %v607
        %v766 = vunpack.c.l.b16 %v608
        %v767 = vpack.c.b16 %v752, %v751
        %v768 = vpack.c.b16 %v754, %v753
        %v769 = vpack.c.b16 %v756, %v755
        %v770 = vpack.c.b16 %v758, %v757
        %v771 = vpack.c.b16 %v760, %v759
        %v772 = vpack.c.b16 %v762, %v761
        %v773 = vpack.c.b16 %v764, %v763
        %v774 = vpack.c.b16 %v766, %v765
        %783 = vmatprep.subr.bf16.mxu0 0
        %784 = vmatpush1.bf16.msra.mxu0 %v774
        %785 = vmatprep.subr.bf16.mxu0 0
        %786 = vmatpush1.bf16.msra.mxu0 %v773
        %787 = vmatprep.subr.bf16.mxu0 0
        %788 = vmatpush1.bf16.msra.mxu0 %v772
        %789 = vmatprep.subr.bf16.mxu0 0
        %790 = vmatpush1.bf16.msra.mxu0 %v771
        %791 = vmatprep.subr.bf16.mxu0 0
        %792 = vmatpush1.bf16.msra.mxu0 %v770
        %793 = vmatprep.subr.bf16.mxu0 0
        %794 = vmatpush1.bf16.msra.mxu0 %v769
        %795 = vmatprep.subr.bf16.mxu0 0
        %796 = vmatpush1.bf16.msra.mxu0 %v768
        %797 = vmatprep.subr.bf16.mxu0 0
        %798 = vmatpush1.bf16.msra.mxu0 %v767
        %799 = vmatprep.subr.bf16.mxu0 0
        %800 = vmatpush2.bf16.msra.mxu0 0
        %801 = vmatprep.subr.bf16.mxu0 0
        %802 = vmatpush2.bf16.msra.mxu0 0
        %803 = vmatprep.subr.bf16.mxu0 0
        %804 = vmatpush2.bf16.msra.mxu0 0
        %805 = vmatprep.subr.bf16.mxu0 0
        %806 = vmatpush2.bf16.msra.mxu0 0
        %807 = vmatprep.subr.bf16.mxu0 0
        %808 = vmatpush2.bf16.msra.mxu0 0
        %809 = vmatprep.subr.bf16.mxu0 0
        %810 = vmatpush2.bf16.msra.mxu0 0
        %811 = vmatprep.subr.bf16.mxu0 0
        %812 = vmatpush2.bf16.msra.mxu0 0
        %813 = vmatprep.subr.bf16.mxu0 0
        %814 = vmatpush2.bf16.msra.mxu0 0
        %815 = vmatprep.mubr.bf16.mxu0 0
        %816 = vmatmul.mubr.bf16.gmra.mxu0 %v576
        %v817 = vpop.f32.mrf.mxu0
        %v818 = vadd.f32 %v721, %v817
        %v819 = vpop.f32.mrf.mxu0
        %v820 = vpop.f32.mrf.mxu0
        %v821 = vadd.f32 %v724, %v820
        %v822 = vpop.f32.mrf.mxu0
        %823 = vmatprep.mubr.bf16.mxu0 0
        %824 = vmatmul.mubr.bf16.gmra.mxu0 %v577
        %v825 = vpop.f32.mrf.mxu0
        %v826 = vadd.f32 %v729, %v825
        %v827 = vpop.f32.mrf.mxu0
        %v828 = vpop.f32.mrf.mxu0
        %v829 = vadd.f32 %v732, %v828
        %v830 = vpop.f32.mrf.mxu0
        %831 = vdwg.mxu0
        %s832 = scalar_lea.vmem %s332, 128 [#allocation3]
        %v833 = vld [vmem:[%s832] sm:$0xf]
        %v834 = vld [vmem:[%s832 + $0x4] sm:$0xf]
        %v835 = vld [vmem:[%s832 + $0x8] sm:$0xf]
        %v836 = vld [vmem:[%s832 + $0xc] sm:$0xf]
        %v837 = vld [vmem:[%s832 + $0x10] sm:$0xf]
        %v838 = vld [vmem:[%s832 + $0x14] sm:$0xf]
        %v839 = vld [vmem:[%s832 + $0x18] sm:$0xf]
        %v840 = vld [vmem:[%s832 + $0x1c] sm:$0xf]
        %v841 = vld [vmem:[%s832 + $0x20] sm:$0xf]
        %v842 = vld [vmem:[%s832 + $0x24] sm:$0xf]
        %v843 = vld [vmem:[%s832 + $0x28] sm:$0xf]
        %v844 = vld [vmem:[%s832 + $0x2c] sm:$0xf]
        %v845 = vld [vmem:[%s832 + $0x30] sm:$0xf]
        %v846 = vld [vmem:[%s832 + $0x34] sm:$0xf]
        %v847 = vld [vmem:[%s832 + $0x38] sm:$0xf]
        %v848 = vld [vmem:[%s832 + $0x3c] sm:$0xf]
        %v865 = vunpack.c.l.b16 %v833
        %v866 = vunpack.c.l.b16 %v834
        %v867 = vunpack.c.l.b16 %v835
        %v868 = vunpack.c.l.b16 %v836
        %v869 = vunpack.c.l.b16 %v837
        %v870 = vunpack.c.l.b16 %v838
        %v871 = vunpack.c.l.b16 %v839
        %v872 = vunpack.c.l.b16 %v840
        %v873 = vunpack.c.l.b16 %v841
        %v874 = vunpack.c.l.b16 %v842
        %v875 = vunpack.c.l.b16 %v843
        %v876 = vunpack.c.l.b16 %v844
        %v877 = vunpack.c.l.b16 %v845
        %v878 = vunpack.c.l.b16 %v846
        %v879 = vunpack.c.l.b16 %v847
        %v880 = vunpack.c.l.b16 %v848
        %v881 = vpack.c.b16 %v866, %v865
        %v882 = vpack.c.b16 %v868, %v867
        %v883 = vpack.c.b16 %v870, %v869
        %v884 = vpack.c.b16 %v872, %v871
        %v885 = vpack.c.b16 %v874, %v873
        %v886 = vpack.c.b16 %v876, %v875
        %v887 = vpack.c.b16 %v878, %v877
        %v888 = vpack.c.b16 %v880, %v879
        %897 = vmatprep.subr.bf16.mxu0 0
        %898 = vmatpush1.bf16.msra.mxu0 %v888
        %899 = vmatprep.subr.bf16.mxu0 0
        %900 = vmatpush1.bf16.msra.mxu0 %v887
        %901 = vmatprep.subr.bf16.mxu0 0
        %902 = vmatpush1.bf16.msra.mxu0 %v886
        %903 = vmatprep.subr.bf16.mxu0 0
        %904 = vmatpush1.bf16.msra.mxu0 %v885
        %905 = vmatprep.subr.bf16.mxu0 0
        %906 = vmatpush1.bf16.msra.mxu0 %v884
        %907 = vmatprep.subr.bf16.mxu0 0
        %908 = vmatpush1.bf16.msra.mxu0 %v883
        %909 = vmatprep.subr.bf16.mxu0 0
        %910 = vmatpush1.bf16.msra.mxu0 %v882
        %911 = vmatprep.subr.bf16.mxu0 0
        %912 = vmatpush1.bf16.msra.mxu0 %v881
        %913 = vmatprep.subr.bf16.mxu0 0
        %914 = vmatpush2.bf16.msra.mxu0 0
        %915 = vmatprep.subr.bf16.mxu0 0
        %916 = vmatpush2.bf16.msra.mxu0 0
        %917 = vmatprep.subr.bf16.mxu0 0
        %918 = vmatpush2.bf16.msra.mxu0 0
        %919 = vmatprep.subr.bf16.mxu0 0
        %920 = vmatpush2.bf16.msra.mxu0 0
        %921 = vmatprep.subr.bf16.mxu0 0
        %922 = vmatpush2.bf16.msra.mxu0 0
        %923 = vmatprep.subr.bf16.mxu0 0
        %924 = vmatpush2.bf16.msra.mxu0 0
        %925 = vmatprep.subr.bf16.mxu0 0
        %926 = vmatpush2.bf16.msra.mxu0 0
        %927 = vmatprep.subr.bf16.mxu0 0
        %928 = vmatpush2.bf16.msra.mxu0 0
        %929 = vmatprep.mubr.bf16.mxu0 0
        %930 = vmatmul.mubr.bf16.gmra.mxu0 %v591
        %v931 = vpop.f32.mrf.mxu0
        %v932 = vadd.f32 0.0, %v931
        %v933 = vpop.f32.mrf.mxu0
        %v934 = vpop.f32.mrf.mxu0
        %v935 = vadd.f32 0.0, %v934
        %v936 = vpop.f32.mrf.mxu0
        %937 = vmatprep.mubr.bf16.mxu0 0
        %938 = vmatmul.mubr.bf16.gmra.mxu0 %v592
        %v939 = vpop.f32.mrf.mxu0
        %v940 = vadd.f32 0.0, %v939
        %v941 = vpop.f32.mrf.mxu0
        %v942 = vpop.f32.mrf.mxu0
        %v943 = vadd.f32 0.0, %v942
        %v944 = vpop.f32.mrf.mxu0
        %945 = vdwg.mxu0
        %v946 = vadd.f32 %v818, %v932
        %v947 = vadd.f32 %v821, %v935
        %v948 = vadd.f32 %v826, %v940
        %v949 = vadd.f32 %v829, %v943
        %v950 = vld [vmem:[%s373] sm:$0x1]
        %v952 = vlaneseq
        %v953 = vshrl.u32 %v952, 7
        %v954 = vsub.s32 0, %v953
        %v955 = vrot.slane %v950, %v954
        %v957 = vadd.f32 %v946, %v955
        %v958 = vadd.f32 %v947, %v955
        %v959 = vadd.f32 %v948, %v955
        %v960 = vadd.f32 %v949, %v955
        %v961 = vmax.f32 %v957, 0.0
        %v962 = vmax.f32 %v958, 0.0
        %v963 = vmax.f32 %v959, 0.0
        %v964 = vmax.f32 %v960, 0.0
        %v965 = vadd.f32 %v961, %v962
        %v966 = vadd.f32 %v965, %v963
        %v967 = vadd.f32 %v966, %v964
        %v968 = vrot.slane %v967, 4
        %v969 = vadd.f32 %v967, %v968
        %v970 = vrot.slane %v969, 2
        %v971 = vadd.f32 %v969, %v970
        %v972 = vrot.slane %v971, 1
        %v973 = vadd.f32 %v971, %v972
        %v974 = vrcp.pop 32.0
        %v975 = vmul.f32 %v973, %v974
        %v976 = vsub.f32 %v961, %v975
        %v977 = vsub.f32 %v962, %v975
        %v978 = vsub.f32 %v963, %v975
        %v979 = vsub.f32 %v964, %v975
        %v980 = vmul.f32 %v976, %v976
        %v981 = vmul.f32 %v977, %v977
        %v982 = vmul.f32 %v978, %v978
        %v983 = vmul.f32 %v979, %v979
        %v984 = vadd.f32 %v980, %v981
        %v985 = vadd.f32 %v984, %v982
        %v986 = vadd.f32 %v985, %v983
        %v987 = vrot.slane %v986, 4
        %v988 = vadd.f32 %v986, %v987
        %v989 = vrot.slane %v988, 2
        %v990 = vadd.f32 %v988, %v989
        %v991 = vrot.slane %v990, 1
        %v992 = vadd.f32 %v990, %v991
        %v993 = vmul.f32 %v992, %v974
        %v994 = vld [vmem:[%s376] sm:$0x1]
        %v995 = vadd.f32 %v993, 1e-05
        %v996 = vrsqrt.pop %v995
        %v997 = vmul.f32 %v994, %v996
        %v999 = vlaneseq
        %v1000 = vshrl.u32 %v999, 7
        %v1001 = vsub.s32 0, %v1000
        %v1002 = vrot.slane %v997, %v1001
        %v1004 = vmul.f32 %v976, %v1002
        %v1005 = vmul.f32 %v977, %v1002
        %v1006 = vmul.f32 %v978, %v1002
        %v1007 = vmul.f32 %v979, %v1002
        %v1008 = vld [vmem:[%s379] sm:$0x1]
        %v1010 = vlaneseq
        %v1011 = vshrl.u32 %v1010, 7
        %v1012 = vsub.s32 0, %v1011
        %v1013 = vrot.slane %v1008, %v1012
        %v1015 = vadd.f32 %v1004, %v1013
        %v1016 = vadd.f32 %v1005, %v1013
        %v1017 = vadd.f32 %v1006, %v1013
        %v1018 = vadd.f32 %v1007, %v1013
        %v1019 = vpack.c.bf16 %v1016, %v1015
        %v1020 = vpack.c.bf16 %v1018, %v1017
        %v1023 = vunpack.c.l.b16 %v1019
        %v1024 = vunpack.c.h.b16 %v1019
        %v1025 = vunpack.c.l.b16 %v1020
        %v1026 = vunpack.c.h.b16 %v1020
        %v1027 = vpack.c.b16 %v1023, %v1023
        %v1028 = vpack.c.b16 %v1024, %v1024
        %v1029 = vpack.c.b16 %v1025, %v1025
        %v1030 = vpack.c.b16 %v1026, %v1026
        %1035 = vst [vmem:[#allocation2] sm:$0xf] %v1027
        %1036 = vst [vmem:[#allocation2 + $0x4] sm:$0xf] %v1028
        %1037 = vst [vmem:[#allocation2 + $0x8] sm:$0xf] %v1029
        %1038 = vst [vmem:[#allocation2 + $0xc] sm:$0xf] %v1030
        %p1039 = scmp.eq.s32.totalorder %s23, 1
        // Predicated region
        $region65: #{cnn_forward.1} parent=55 // pred_check
          %p1040 = pneg %p1039
        $region66: #{cnn_forward.1} parent=55 // pred_check_branch
          %1042 = sbr.rel (%p1040) target = $region68
        $region67: #{cnn_forward.1} parent=55 // pred_region
          %v1043 = vld [vmem:[%s7] sm:$0xf]
          %v1044 = vld [vmem:[%s7 + $0x4] sm:$0xf]
          %v1045 = vld [vmem:[%s7 + $0x8] sm:$0xf]
          %v1046 = vld [vmem:[%s7 + $0xc] sm:$0xf]
          %v1047 = vld [vmem:[%s7 + $0x10] sm:$0xf]
          %v1048 = vld [vmem:[%s7 + $0x14] sm:$0xf]
          %v1049 = vld [vmem:[%s7 + $0x18] sm:$0xf]
          %v1050 = vld [vmem:[%s7 + $0x1c] sm:$0xf]
          %v1051 = vld [vmem:[%s7 + $0x20] sm:$0xf]
          %v1052 = vld [vmem:[%s7 + $0x24] sm:$0xf]
          %v1053 = vld [vmem:[%s7 + $0x28] sm:$0xf]
          %v1054 = vld [vmem:[%s7 + $0x2c] sm:$0xf]
          %v1055 = vld [vmem:[%s7 + $0x30] sm:$0xf]
          %v1056 = vld [vmem:[%s7 + $0x34] sm:$0xf]
          %v1057 = vld [vmem:[%s7 + $0x38] sm:$0xf]
          %v1058 = vld [vmem:[%s7 + $0x3c] sm:$0xf]
          %v1059 = vld [vmem:[%s8] sm:$0x1]
          %v1061 = vlaneseq
          %v1062 = vshrl.u32 %v1061, 7
          %v1063 = vsub.s32 0, %v1062
          %v1064 = vrot.slane %v1059, %v1063
          %v1082 = vunpack.c.l.b16 %v1043
          %v1083 = vunpack.c.l.b16 %v1044
          %v1084 = vunpack.c.l.b16 %v1045
          %v1085 = vunpack.c.l.b16 %v1046
          %v1086 = vunpack.c.l.b16 %v1047
          %v1087 = vunpack.c.l.b16 %v1048
          %v1088 = vunpack.c.l.b16 %v1049
          %v1089 = vunpack.c.l.b16 %v1050
          %v1090 = vunpack.c.l.b16 %v1051
          %v1091 = vunpack.c.l.b16 %v1052
          %v1092 = vunpack.c.l.b16 %v1053
          %v1093 = vunpack.c.l.b16 %v1054
          %v1094 = vunpack.c.l.b16 %v1055
          %v1095 = vunpack.c.l.b16 %v1056
          %v1096 = vunpack.c.l.b16 %v1057
          %v1097 = vunpack.c.l.b16 %v1058
          %v1098 = vpack.c.b16 %v1083, %v1082
          %v1099 = vpack.c.b16 %v1085, %v1084
          %v1100 = vpack.c.b16 %v1087, %v1086
          %v1101 = vpack.c.b16 %v1089, %v1088
          %v1102 = vpack.c.b16 %v1091, %v1090
          %v1103 = vpack.c.b16 %v1093, %v1092
          %v1104 = vpack.c.b16 %v1095, %v1094
          %v1105 = vpack.c.b16 %v1097, %v1096
          %1114 = vmatprep.subr.bf16.mxu0 0
          %1115 = vmatpush1.bf16.msra.mxu0 %v1105
          %1116 = vmatprep.subr.bf16.mxu0 0
          %1117 = vmatpush1.bf16.msra.mxu0 %v1104
          %1118 = vmatprep.subr.bf16.mxu0 0
          %1119 = vmatpush1.bf16.msra.mxu0 %v1103
          %1120 = vmatprep.subr.bf16.mxu0 0
          %1121 = vmatpush1.bf16.msra.mxu0 %v1102
          %1122 = vmatprep.subr.bf16.mxu0 0
          %1123 = vmatpush1.bf16.msra.mxu0 %v1101
          %1124 = vmatprep.subr.bf16.mxu0 0
          %1125 = vmatpush1.bf16.msra.mxu0 %v1100
          %1126 = vmatprep.subr.bf16.mxu0 0
          %1127 = vmatpush1.bf16.msra.mxu0 %v1099
          %1128 = vmatprep.subr.bf16.mxu0 0
          %1129 = vmatpush1.bf16.msra.mxu0 %v1098
          %1130 = vmatprep.subr.bf16.mxu0 0
          %1131 = vmatpush2.bf16.msra.mxu0 0
          %1132 = vmatprep.subr.bf16.mxu0 0
          %1133 = vmatpush2.bf16.msra.mxu0 0
          %1134 = vmatprep.subr.bf16.mxu0 0
          %1135 = vmatpush2.bf16.msra.mxu0 0
          %1136 = vmatprep.subr.bf16.mxu0 0
          %1137 = vmatpush2.bf16.msra.mxu0 0
          %1138 = vmatprep.subr.bf16.mxu0 0
          %1139 = vmatpush2.bf16.msra.mxu0 0
          %1140 = vmatprep.subr.bf16.mxu0 0
          %1141 = vmatpush2.bf16.msra.mxu0 0
          %1142 = vmatprep.subr.bf16.mxu0 0
          %1143 = vmatpush2.bf16.msra.mxu0 0
          %1144 = vmatprep.subr.bf16.mxu0 0
          %1145 = vmatpush2.bf16.msra.mxu0 0
          %1146 = vmatprep.mubr.bf16.mxu0 0
          %1147 = vmatmul.mubr.bf16.gmra.mxu0 %v1019
          %v1148 = vpop.f32.mrf.mxu0
          %v1149 = vadd.f32 %v1064, %v1148
          %v1150 = vpop.f32.mrf.mxu0
          %v1151 = vpop.f32.mrf.mxu0
          %v1152 = vadd.f32 %v1064, %v1151
          %v1153 = vpop.f32.mrf.mxu0
          %1154 = vmatprep.mubr.bf16.mxu0 0
          %1155 = vmatmul.mubr.bf16.gmra.mxu0 %v1020
          %v1156 = vpop.f32.mrf.mxu0
          %v1157 = vadd.f32 %v1064, %v1156
          %v1158 = vpop.f32.mrf.mxu0
          %v1159 = vpop.f32.mrf.mxu0
          %v1160 = vadd.f32 %v1064, %v1159
          %v1161 = vpop.f32.mrf.mxu0
          %1162 = vdwg.mxu0
          %1163 = vst [vmem:[%s9] sm:$0xff] %v1149
          %1164 = vst [vmem:[%s9 + $0x8] sm:$0xff] %v1152
          %1165 = vst [vmem:[%s9 + $0x10] sm:$0xff] %v1157
          %1166 = vst [vmem:[%s9 + $0x18] sm:$0xff] %v1160
        $region68: #{cnn_forward.1} parent=55 // pred_fallthru
          _
        // Predicated region
        $region69: #{cnn_forward.1} parent=55 // pred_check
          %p1167 = pneg %p245
        $region70: #{cnn_forward.1} parent=55 // pred_check_branch
          %1169 = sbr.rel (%p1167) target = $region72
        $region71: #{cnn_forward.1} parent=55 // pred_region
          _
        $region72: #{cnn_forward.1} parent=55 // pred_fallthru
          _
        // Predicated region
        $region73: #{cnn_forward.1} parent=55 // pred_check
          %p1170 = pneg %p245
        $region74: #{cnn_forward.1} parent=55 // pred_check_branch
          %1172 = sbr.rel (%p1170) target = $region76
        $region75: #{cnn_forward.1} parent=55 // pred_region
          _
        $region76: #{cnn_forward.1} parent=55 // pred_fallthru
          _
      $region56: #{cnn_forward.1} parent=5 // pred_fallthru
        _
      %p1173 = scmp.le.s32.totalorder 2, %s18
      // Predicated region
      $region77: #{cnn_forward.1} parent=5 // pred_check
        %p1174 = pneg %p1173
      $region78: #{cnn_forward.1} parent=5 // pred_check_branch
        %1176 = sbr.rel (%p1174) target = $region80
      $region79: #{cnn_forward.1} parent=5 // pred_region
        %s1177 = ssub.s32 %s18, 2
      $region80: #{cnn_forward.1} parent=5 // pred_fallthru
        _
    $region6: #{cnn_forward.1} parent=1 // loop_footer
      %s22 = sadd.s32 1, %s18
    $region7: #{cnn_forward.1} parent=1 // loop_footer_branch
      %17 = sbr.rel target = $region3
    $region8: #{cnn_forward.1} parent=1 // loop_exit
      _
    %1178 = vsyncpa [#allocation4], 1
    %s1179 = scalar_lea.sflag [#allocation4], 1
    %1180 = vsyncpa %s1179, 1

</llo_original>
